<compile_context>
chip_gen: v5e
topology: v5e:2x2
jax: 0.10.0
libtpu: 0.0.40
codegen_flags: <defaults>
</compile_context>

<pallas_src>
import functools

import jax
import jax.numpy as jnp
from jax.experimental import pallas as pl
from jax.experimental.pallas import tpu as pltpu

_LANES = 128      # vreg lane width
_CHUNK_SUB = 8    # vreg sublane height; one chunk = (8, 128) = 1024 pixels


def _ce2d_kernel(w_ref, x_ref, t_ref, num_ref, den_ref, *,
                 ignore_label, num_classes, n_chunks, rows_total,
                 sub_rows, need_row_mask, unroll):
    """One grid step = one (image, pixel-block) pair.

    w_ref:   (C, 8, 128)       f32 VMEM  per-class weights, pre-broadcast
    x_ref:   (C, SUB, 128)     VMEM      logits block (pixels on sublane+lane)
    t_ref:   (SUB, 128)   i32  VMEM      target class ids
    num_ref: (1, 1, 1, 1) f32            partial sum of  w[t] * (-log p_t)
    den_ref: (1, 1, 1, 1) f32            partial sum of  w[t]
    """
    C, CS = num_classes, _CHUNK_SUB
    j = pl.program_id(1)
    row_base = j * sub_rows

    # Loop invariants, hoisted (JAX does not CSE broadcast/iota inside loops).
    w_b = w_ref[...]                                                # (C, 8, 128)
    cls = jax.lax.broadcasted_iota(jnp.int32, (C, CS, _LANES), 0)   # channel ids
    row_iota = (jax.lax.broadcasted_iota(jnp.int32, (CS, _LANES), 0)
                if need_row_mask else None)

    def body(k, carry):
        acc_n, acc_d = carry
        start = pl.multiple_of(k * CS, CS)
        x = x_ref[:, pl.ds(start, CS), :].astype(jnp.float32)       # (C, 8, 128)
        t = t_ref[pl.ds(start, CS), :]                              # (8, 128) i32

        # Numerically stable log-softmax over the (leading) channel axis:
        # the reductions are dense vreg-vs-vreg VPU ops, exp/log on the EUP.
        m = jnp.max(x, axis=0)                                      # (8, 128)
        z = x - m[None]                                             # (C, 8, 128)
        s = jnp.sum(jnp.exp(z), axis=0)                             # (8, 128)

        # Gather the target channel's z and class weight with dense selects.
        hit = cls == t[None]                                        # (C, 8, 128)
        z_t = jnp.sum(jnp.where(hit, z, 0.0), axis=0)               # (8, 128)
        w_t = jnp.sum(jnp.where(hit, w_b, 0.0), axis=0)             # (8, 128)
        logp_t = z_t - jnp.log(s)

        # Padded pixels were written with ignore_label, so aligned blocks only
        # pay this one compare.  NOTE: labels outside [0, C) that are not
        # ignore_label are silently dropped (w_t = z_t = 0); PyTorch's NLLLoss
        # would error / produce garbage for those.
        valid = t != ignore_label
        if need_row_mask:
            # Ragged last block: rows >= rows_total hold stale VMEM garbage.
            row = (row_base + start) + row_iota
            valid = jnp.logical_and(valid, row < rows_total)

        # jnp.where (select), NOT multiply-by-mask: garbage logits in masked
        # pixels may have produced Inf/NaN which must not poison the sums.
        acc_n = acc_n + jnp.where(valid, -w_t * logp_t, 0.0)
        acc_d = acc_d + jnp.where(valid, w_t, 0.0)
        return acc_n, acc_d

    zero = jnp.zeros((CS, _LANES), jnp.float32)
    acc_n, acc_d = jax.lax.fori_loop(0, n_chunks, body, (zero, zero),
                                     unroll=unroll)

    # Single cross-lane/sublane reduction per (image, block).
    num_ref[...] = jnp.sum(acc_n).reshape(1, 1, 1, 1)
    den_ref[...] = jnp.sum(acc_d).reshape(1, 1, 1, 1)


def _pick_block_rows(rows_total, c, itemsize, block_bytes):
    """Sublane rows per pixel block: multiple of 8, logits block ~= block_bytes."""
    rows = max(_CHUNK_SUB,
               (block_bytes // (_LANES * c * itemsize)) // _CHUNK_SUB * _CHUNK_SUB)
    return min(rows, rows_total)


def cross_entropy_loss_2d(outputs, targets, weight=None, ignore_label=255,
                          block_bytes=6 * 1024 * 1024):
    """Equivalent of CrossEntropyLoss2d.forward(outputs, targets).

    outputs: [N, C, H, W] float logits (NCHW, consumed in place)
    targets: [N, H, W] integer class ids (ignore_label entries skipped)
    weight:  optional [C] per-class weight vector
    Returns the weighted-mean NLL over valid pixels (nn.NLLLoss 'mean').
    """
    N, C, H, W = outputs.shape
    HW = H * W
    pix_align = _CHUNK_SUB * _LANES                       # 1024 pixels
    HW_pad = ((HW + pix_align - 1) // pix_align) * pix_align

    x = outputs.reshape(N, C, HW)
    t = targets.reshape(N, HW).astype(jnp.int32)
    if HW_pad != HW:
        # Pad (copy) only when H*W is not a multiple of 1024; padded pixels
        # carry ignore_label so they drop out inside the kernel.
        x = jnp.pad(x, ((0, 0), (0, 0), (0, HW_pad - HW)))
        t = jnp.pad(t, ((0, 0), (0, HW_pad - HW)), constant_values=ignore_label)
    rows = HW_pad // _LANES                               # multiple of 8
    x = x.reshape(N, C, rows, _LANES)                     # free reshape (metadata)
    t = t.reshape(N, rows, _LANES)

    if weight is None:
        w = jnp.ones((C,), jnp.float32)
    else:
        w = jnp.asarray(weight, jnp.float32).reshape(C)
    # Tiny pre-broadcast weight tile so the kernel never re-broadcasts.
    w_b = jnp.broadcast_to(w.reshape(C, 1, 1), (C, _CHUNK_SUB, _LANES))

    sub_rows = _pick_block_rows(rows, C, x.dtype.itemsize, block_bytes)
    n_blocks = pl.cdiv(rows, sub_rows)
    n_chunks = sub_rows // _CHUNK_SUB
    need_row_mask = (rows % sub_rows) != 0
    unroll = n_chunks if n_chunks <= 8 else 8

    kernel = functools.partial(
        _ce2d_kernel, ignore_label=ignore_label, num_classes=C,
        n_chunks=n_chunks, rows_total=rows, sub_rows=sub_rows,
        need_row_mask=need_row_mask, unroll=unroll)

    # VMEM budget from the actual buffers: double-buffered logits + targets
    # blocks plus the weight tile (stays well inside v7x's 64 MiB VMEM).
    x_blk = sub_rows * _LANES * C * x.dtype.itemsize
    t_blk = sub_rows * _LANES * 4
    vmem_limit = int(min(48 * 1024 * 1024,
                         max(8 * 1024 * 1024,
                             2 * (x_blk + t_blk) + w_b.size * 4
                             + 4 * 1024 * 1024)))

    num, den = pl.pallas_call(
        kernel,
        out_shape=(
            jax.ShapeDtypeStruct((N, n_blocks, 1, 1), jnp.float32),
            jax.ShapeDtypeStruct((N, n_blocks, 1, 1), jnp.float32),
        ),
        grid_spec=pltpu.PrefetchScalarGridSpec(
            num_scalar_prefetch=0,
            grid=(N, n_blocks),
            in_specs=[
                pl.BlockSpec((C, _CHUNK_SUB, _LANES),
                             lambda n, j: (0, 0, 0)),                 # weights
                pl.BlockSpec((None, C, sub_rows, _LANES),
                             lambda n, j: (n, 0, j, 0)),              # logits
                pl.BlockSpec((None, sub_rows, _LANES),
                             lambda n, j: (n, j, 0)),                 # targets
            ],
            out_specs=(
                pl.BlockSpec((1, 1, 1, 1), lambda n, j: (n, j, 0, 0)),
                pl.BlockSpec((1, 1, 1, 1), lambda n, j: (n, j, 0, 0)),
            ),
        ),
        compiler_params=pltpu.CompilerParams(
            dimension_semantics=("parallel", "parallel"),
            vmem_limit_bytes=vmem_limit,
        ),
    )(w_b, x, t)

    # nn.NLLLoss 'mean': sum(w_t * nll) / sum(w_t) over non-ignored pixels.
    # (If every pixel is ignored this is 0/0 = NaN, matching PyTorch.)
    return jnp.sum(num) / jnp.sum(den)


def _reference_loss(outputs, targets, weight=None, ignore_label=255):
    """Pure-JAX reference for verification."""
    N, C, H, W = outputs.shape
    x = jnp.transpose(outputs, (0, 2, 3, 1)).reshape(-1, C).astype(jnp.float32)
    t = targets.reshape(-1).astype(jnp.int32)
    logp = jax.nn.log_softmax(x, axis=-1)
    valid = t != ignore_label
    t_safe = jnp.where(valid, t, 0)
    logp_t = jnp.take_along_axis(logp, t_safe[:, None], axis=-1)[:, 0]
    w = jnp.ones((C,), jnp.float32) if weight is None else jnp.asarray(weight, jnp.float32)
    w_t = w[t_safe] * valid.astype(jnp.float32)
    return jnp.sum(-w_t * logp_t) / jnp.sum(w_t)


if __name__ == "__main__":
    key = jax.random.PRNGKey(0)
    k1, k2, k3, k4 = jax.random.split(key, 4)
    ignore_label = 255

    # --- test 1: small canonical shape, unweighted and weighted ---
    N, C, H, W = 2, 4, 16, 16
    outputs = jax.random.normal(k1, (N, C, H, W), dtype=jnp.float32)
    targets = jax.random.randint(k2, (N, H, W), 0, C, dtype=jnp.int32)
    targets = targets.at[:, 0, :4].set(ignore_label)          # some ignored pixels
    weight = jnp.array([1.0, 0.5, 2.0, 1.5], dtype=jnp.float32)

    loss_u = cross_entropy_loss_2d(outputs, targets, None, ignore_label)
    jax.block_until_ready(loss_u)
    ref_u = _reference_loss(outputs, targets, None, ignore_label)
    assert jnp.allclose(loss_u, ref_u, rtol=1e-5, atol=1e-5), (loss_u, ref_u)

    loss_w = cross_entropy_loss_2d(outputs, targets, weight, ignore_label)
    jax.block_until_ready(loss_w)
    ref_w = _reference_loss(outputs, targets, weight, ignore_label)
    assert jnp.allclose(loss_w, ref_w, rtol=1e-5, atol=1e-5), (loss_w, ref_w)

    # --- test 2: H*W not a multiple of 1024 -> exercises the pad path, a
    #             multi-block grid and the ragged-row mask ---
    N2, C2, H2, W2 = 2, 4, 50, 50            # H*W = 2500 -> 24 sublane rows
    outputs2 = jax.random.normal(k3, (N2, C2, H2, W2), dtype=jnp.float32)
    targets2 = jax.random.randint(k4, (N2, H2, W2), 0, C2, dtype=jnp.int32)
    targets2 = targets2.at[:, -1, :].set(ignore_label)
    ref_r = _reference_loss(outputs2, targets2, weight, ignore_label)

    loss_r = cross_entropy_loss_2d(outputs2, targets2, weight, ignore_label)
    jax.block_until_ready(loss_r)
    assert jnp.allclose(loss_r, ref_r, rtol=1e-5, atol=1e-5), (loss_r, ref_r)

    # Force 16-row pixel blocks -> 2 blocks per image with a ragged last block.
    loss_r2 = cross_entropy_loss_2d(outputs2, targets2, weight, ignore_label,
                                    block_bytes=16 * _LANES * C2 * 4)
    jax.block_until_ready(loss_r2)
    assert jnp.allclose(loss_r2, ref_r, rtol=1e-5, atol=1e-5), (loss_r2, ref_r)

    print("KERNEL_OK")
</pallas_src>

<mosaic_0001>
module attributes {stable_mosaic.version = 11 : i64} {
  func.func @_ce2d_kernel(%arg0: i32, %arg1: i32, %arg2: memref<4x8x128xf32, #tpu.memory_space<vmem>>, %arg3: memref<1x4x8x128xf32, #tpu.memory_space<vmem>>, %arg4: memref<1x8x128xi32, #tpu.memory_space<vmem>>, %arg5: memref<1x1x1x1xf32, #tpu.memory_space<vmem>>, %arg6: memref<1x1x1x1xf32, #tpu.memory_space<vmem>>) attributes {dimension_semantics = [#tpu.dimension_semantics<parallel>, #tpu.dimension_semantics<parallel>], iteration_bounds = array<i64: 2, 1>, scalar_prefetch = 0 : i64, scratch_operands = 0 : i64, tpu.core_type = #tpu.core_type<tc>, window_params = [{pipeline_mode = #tpu.pipeline_mode<synchronous>, transform_indices = @transform_0, window_bounds = array<i64: 4, 8, 128>}, {transform_indices = @transform_1, window_bounds = array<i64: 1, 4, 8, 128>}, {transform_indices = @transform_2, window_bounds = array<i64: 1, 8, 128>}, {transform_indices = @transform_3, window_bounds = array<i64: 1, 1, 1, 1>}, {transform_indices = @transform_4, window_bounds = array<i64: 1, 1, 1, 1>}]} {
    %c0 = arith.constant 0 : index
    %c0_0 = arith.constant 0 : index
    %c0_1 = arith.constant 0 : index
    %0 = vector.load %arg2[%c0, %c0_0, %c0_1] : memref<4x8x128xf32, #tpu.memory_space<vmem>>, vector<4x8x128xf32>
    %1 = tpu.iota {dimensions = array<i32: 0>} : vector<4x8x128xi32>
    %cst = arith.constant 0.000000e+00 : f32
    %2 = vector.broadcast %cst : f32 to vector<8x128xf32>
    %c0_i32 = arith.constant 0 : i32
    %c8_i32 = arith.constant 8 : i32
    %3 = arith.muli %c0_i32, %c8_i32 : i32
    %4 = tpu.assume_multiple %3, 8 : i32
    %c0_2 = arith.constant 0 : index
    %c0_3 = arith.constant 0 : index
    %5 = arith.index_cast %4 : i32 to index
    %c0_4 = arith.constant 0 : index
    %6 = vector.load %arg3[%c0_2, %c0_3, %5, %c0_4] : memref<1x4x8x128xf32, #tpu.memory_space<vmem>>, vector<1x4x8x128xf32>
    %7 = vector.shape_cast %6 : vector<1x4x8x128xf32> to vector<4x8x128xf32>
    %c0_5 = arith.constant 0 : index
    %8 = arith.index_cast %4 : i32 to index
    %c0_6 = arith.constant 0 : index
    %9 = vector.load %arg4[%c0_5, %8, %c0_6] : memref<1x8x128xi32, #tpu.memory_space<vmem>>, vector<1x8x128xi32>
    %10 = vector.shape_cast %9 : vector<1x8x128xi32> to vector<8x128xi32>
    %cst_7 = arith.constant dense<0xFF800000> : vector<8x128xf32>
    %11 = vector.multi_reduction <maximumf>, %7, %cst_7 [0] : vector<4x8x128xf32> to vector<8x128xf32>
    %12 = vector.shape_cast %11 : vector<8x128xf32> to vector<1x8x128xf32>
    %13 = vector.broadcast %12 : vector<1x8x128xf32> to vector<4x8x128xf32>
    %14 = arith.subf %7, %13 : vector<4x8x128xf32>
    %15 = math.exp %14 : vector<4x8x128xf32>
    %cst_8 = arith.constant dense<0.000000e+00> : vector<8x128xf32>
    %16 = vector.multi_reduction <add>, %15, %cst_8 [0] : vector<4x8x128xf32> to vector<8x128xf32>
    %17 = vector.shape_cast %10 : vector<8x128xi32> to vector<1x8x128xi32>
    %18 = vector.broadcast %17 : vector<1x8x128xi32> to vector<4x8x128xi32>
    %19 = arith.cmpi eq, %1, %18 : vector<4x8x128xi32>
    %cst_9 = arith.constant 0.000000e+00 : f32
    %20 = vector.broadcast %cst_9 : f32 to vector<4x8x128xf32>
    %21 = arith.select %19, %14, %20 : vector<4x8x128xi1>, vector<4x8x128xf32>
    %cst_10 = arith.constant dense<0.000000e+00> : vector<8x128xf32>
    %22 = vector.multi_reduction <add>, %21, %cst_10 [0] : vector<4x8x128xf32> to vector<8x128xf32>
    %cst_11 = arith.constant 0.000000e+00 : f32
    %23 = vector.broadcast %cst_11 : f32 to vector<4x8x128xf32>
    %24 = arith.select %19, %0, %23 : vector<4x8x128xi1>, vector<4x8x128xf32>
    %cst_12 = arith.constant dense<0.000000e+00> : vector<8x128xf32>
    %25 = vector.multi_reduction <add>, %24, %cst_12 [0] : vector<4x8x128xf32> to vector<8x128xf32>
    %26 = math.log %16 : vector<8x128xf32>
    %27 = arith.subf %22, %26 : vector<8x128xf32>
    %c255_i32 = arith.constant 255 : i32
    %28 = vector.broadcast %c255_i32 : i32 to vector<8x128xi32>
    %29 = arith.cmpi ne, %10, %28 : vector<8x128xi32>
    %cst_13 = arith.constant 0.000000e+00 : f32
    %30 = vector.broadcast %cst_13 : f32 to vector<8x128xf32>
    %31 = arith.subf %30, %25 : vector<8x128xf32>
    %32 = arith.mulf %31, %27 : vector<8x128xf32>
    %cst_14 = arith.constant 0.000000e+00 : f32
    %33 = vector.broadcast %cst_14 : f32 to vector<8x128xf32>
    %34 = arith.select %29, %32, %33 : vector<8x128xi1>, vector<8x128xf32>
    %35 = arith.addf %2, %34 : vector<8x128xf32>
    %cst_15 = arith.constant 0.000000e+00 : f32
    %36 = vector.broadcast %cst_15 : f32 to vector<8x128xf32>
    %37 = arith.select %29, %25, %36 : vector<8x128xi1>, vector<8x128xf32>
    %38 = arith.addf %2, %37 : vector<8x128xf32>
    %c1_i32 = arith.constant 1 : i32
    %39 = vector.shape_cast %35 : vector<8x128xf32> to vector<1x8x128xf32>
    %cst_16 = arith.constant dense<0.000000e+00> : vector<1xf32>
    %40 = vector.multi_reduction <add>, %39, %cst_16 [1, 2] : vector<1x8x128xf32> to vector<1xf32>
    %41 = vector.shape_cast %40 : vector<1xf32> to vector<1x1x1xf32>
    %42 = vector.extract %41[0, 0, 0] : f32 from vector<1x1x1xf32>
    %43 = vector.broadcast %42 : f32 to vector<1x1x1x1xf32>
    %c0_17 = arith.constant 0 : index
    %c0_18 = arith.constant 0 : index
    %c0_19 = arith.constant 0 : index
    %c0_20 = arith.constant 0 : index
    %44 = vector.load %arg5[%c0_17, %c0_18, %c0_19, %c0_20] : memref<1x1x1x1xf32, #tpu.memory_space<vmem>>, vector<1x1x1x1xf32>
    tpu.vector_store %arg5[%c0_17, %c0_18, %c0_19, %c0_20], %43 {strides = array<i32>} : memref<1x1x1x1xf32, #tpu.memory_space<vmem>>, vector<1x1x1x1xf32>,
    %45 = vector.shape_cast %38 : vector<8x128xf32> to vector<1x8x128xf32>
    %cst_21 = arith.constant dense<0.000000e+00> : vector<1xf32>
    %46 = vector.multi_reduction <add>, %45, %cst_21 [1, 2] : vector<1x8x128xf32> to vector<1xf32>
    %47 = vector.shape_cast %46 : vector<1xf32> to vector<1x1x1xf32>
    %48 = vector.extract %47[0, 0, 0] : f32 from vector<1x1x1xf32>
    %49 = vector.broadcast %48 : f32 to vector<1x1x1x1xf32>
    %c0_22 = arith.constant 0 : index
    %c0_23 = arith.constant 0 : index
    %c0_24 = arith.constant 0 : index
    %c0_25 = arith.constant 0 : index
    %50 = vector.load %arg6[%c0_22, %c0_23, %c0_24, %c0_25] : memref<1x1x1x1xf32, #tpu.memory_space<vmem>>, vector<1x1x1x1xf32>
    tpu.vector_store %arg6[%c0_22, %c0_23, %c0_24, %c0_25], %49 {strides = array<i32>} : memref<1x1x1x1xf32, #tpu.memory_space<vmem>>, vector<1x1x1x1xf32>,
    return
  }
  func.func @transform_0(%arg0: i32, %arg1: i32) -> (i32, i32, i32) {
    %c0_i32 = arith.constant 0 : i32
    %c0_i32_0 = arith.constant 0 : i32
    %c0_i32_1 = arith.constant 0 : i32
    %c0_i32_2 = arith.constant 0 : i32
    return %c0_i32, %c0_i32_0, %c0_i32_1 : i32, i32, i32
  }
  func.func @transform_1(%arg0: i32, %arg1: i32) -> (i32, i32, i32, i32) {
    %c0_i32 = arith.constant 0 : i32
    %c0_i32_0 = arith.constant 0 : i32
    %c0_i32_1 = arith.constant 0 : i32
    return %arg0, %c0_i32, %arg1, %c0_i32_0 : i32, i32, i32, i32
  }
  func.func @transform_2(%arg0: i32, %arg1: i32) -> (i32, i32, i32) {
    %c0_i32 = arith.constant 0 : i32
    %c0_i32_0 = arith.constant 0 : i32
    return %arg0, %arg1, %c0_i32 : i32, i32, i32
  }
  func.func @transform_3(%arg0: i32, %arg1: i32) -> (i32, i32, i32, i32) {
    %c0_i32 = arith.constant 0 : i32
    %c0_i32_0 = arith.constant 0 : i32
    %c0_i32_1 = arith.constant 0 : i32
    return %arg0, %arg1, %c0_i32, %c0_i32_0 : i32, i32, i32, i32
  }
  func.func @transform_4(%arg0: i32, %arg1: i32) -> (i32, i32, i32, i32) {
    %c0_i32 = arith.constant 0 : i32
    %c0_i32_0 = arith.constant 0 : i32
    %c0_i32_1 = arith.constant 0 : i32
    return %arg0, %arg1, %c0_i32, %c0_i32_0 : i32, i32, i32, i32
  }
}

</mosaic_0001>

<llo_original>
// kernel: tpu_custom_call.1
$region0: #{tpu_custom_call.1}
  #allocation0 [shape = 'u32[]', space=smem, size = 0x4, offset = 0x4, fixed_abs, tag = 'smem constant byte address 0x4 - core index']
  #allocation1 [shape = 'u32[72,128]{1,0:T(1,128)}', space=vmem, size = 0x9000, scoped, tag = 'internal scratch']
  %s0 = inlined_call_operand.hbm [shape: f32[4,8,128], index: 0, kind: input, shape index: {}]
  %s1 = inlined_call_operand.hbm [shape: f32[2,4,8,128], index: 1, kind: input, shape index: {}]
  %s2 = inlined_call_operand.hbm [shape: s32[2,8,128], index: 2, kind: input, shape index: {}]
  %s3 = inlined_call_operand.vmem [shape: f32[2,1,1,1], index: 3, kind: output, shape index: {0}]
  %s4 = inlined_call_operand.vmem [shape: f32[2,1,1,1], index: 4, kind: output, shape index: {1}]
  %5 = xla_tuple %s3, %s4
  %s6 = sld [smem:[#allocation0]]
  $region65: #{tpu_custom_call.1} parent=0
    _
  %s8 = ssub.s32 1, %s6
  %s9 = scalar_select 0, %s8, %s6
  $region1: #{tpu_custom_call.1} parent=0
    #allocation2 [shape = 'u8[16384]{0}', space=vmem, size = 0x4000, scoped, tag = 'input window, operand 0, single buffered']
    #allocation3 [shape = 's32[2]{0}', space=sflag, size = 0x8, scoped, tag = 'scoped memory for tpu_custom_call.1']
    #allocation4 [shape = 'u8[32768]{0}', space=vmem, size = 0x8000, scoped, tag = 'input window, operand 1']
    #allocation5 [shape = 's32[2]{0}', space=sflag, size = 0x8, scoped, tag = 'scoped memory for tpu_custom_call.1']
    #allocation6 [shape = 'u8[8192]{0}', space=vmem, size = 0x2000, scoped, tag = 'input window, operand 2']
    %10 = vsyncpa [#allocation3], 0
    %11 = vsyncpa [#allocation5], 0
    %s12 = scalar_lea.sflag [#allocation5], 1
    %13 = vsyncpa %s12, 0
    loop: start=0, step=1, limit=4
    $region2: #{tpu_custom_call.1} parent=1 // loop_pre_header
      _
    $region3: #{tpu_custom_call.1} parent=1 // loop_header
      %s15 = sphi 0, %s19
      %p16 = scmp.ge.s32.totalorder %s15, 4
      %s22 = sphi 0, %s34
      %s23 = sphi 0, %s30
      %s24 = sphi 0, %s22
      %s25 = sphi 0, %s23
      %s26 = sphi 0, %s24
      %s27 = sphi 0, %s25
      %s35 = sphi 0, %s35
      %s37 = sphi 0, %s35
      %s38 = sphi 0, %s37
      %s52 = sphi 0, %s38
      %s60 = sphi 0, %s62
      %s63 = sphi 0, %s60
      %s64 = sphi 0, %s63
      %s80 = sphi 0, %s64
      %s88 = sphi 0, %s90
      %s91 = sphi 0, %s88
      %s92 = sphi 0, %s91
      %s108 = sphi 0, %s92
      %s116 = sphi 0, %s118
      %s119 = sphi 0, %s116
      %s120 = sphi 0, %s119
      %s136 = sphi 0, %s120
      %s144 = sphi 0, %s146
      %s147 = sphi 0, %s144
      %s148 = sphi 0, %s147
      %s164 = sphi 0, %s148
    $region4: #{tpu_custom_call.1} parent=1 // loop_header_branch
      %18 = sbr.rel (%p16) target = $region8
    $region5: #{tpu_custom_call.1} parent=1 // loop_body
      %s20 = ssub.s32 %s15, 1
      %s21 = ssub.s32 %s15, 2
      %s28 = sadd.s32 1, %s23
      %p29 = scmp.ge.s32.totalorder %s28, 1
      %s30 = scalar_select %p29, 0, %s28
      %s31 = sadd.s32 1, %s22
      %s32 = scalar_select %p29, %s31, %s22
      %p33 = scmp.ge.s32.totalorder %s32, 2
      %s34 = scalar_select %p33, 0, %s32
      %s36 = sadd.s32 %s35, 1
      %p39 = scmp.eq.s32.totalorder %s15, 1
      %p40 = scmp.ne.s32.totalorder %s35, %s37
      %p41 = scmp.eq.s32.totalorder %s15, 0
      %p42 = por %p40, %p41
      %p43 = scmp.ne.s32.totalorder %s35, %s37
      %p44 = scmp.eq.s32.totalorder %s20, 1
      %p45 = por %p43, %p44
      %p46 = scmp.ne.s32.totalorder %s37, %s38
      %p47 = scmp.eq.s32.totalorder %s20, 0
      %p48 = por %p46, %p47
      %p49 = scmp.ne.s32.totalorder %s37, %s38
      %p50 = scmp.eq.s32.totalorder %s21, 1
      %p51 = por %p49, %p50
      %p53 = scmp.ne.s32.totalorder %s38, %s52
      %p54 = scmp.eq.s32.totalorder %s21, 0
      %p55 = por %p53, %p54
      %s56 = ssub.s32 %s22, %s34
      %s57 = ssub.s32 %s23, %s30
      %s58 = sor.u32 %s56, %s57
      %p59 = scmp.eq.s32.totalorder %s58, 0
      %s61 = sadd.s32 %s60, 1
      %s62 = scalar_select %p59, %s60, %s61
      %p65 = pneg %p59
      %p66 = scmp.eq.s32.totalorder %s15, 1
      %p67 = por %p65, %p66
      %p68 = scmp.ne.s32.totalorder %s60, %s63
      %p69 = scmp.eq.s32.totalorder %s15, 0
      %p70 = por %p68, %p69
      %p71 = scmp.ne.s32.totalorder %s60, %s63
      %p72 = scmp.eq.s32.totalorder %s20, 1
      %p73 = por %p71, %p72
      %p74 = scmp.ne.s32.totalorder %s63, %s64
      %p75 = scmp.eq.s32.totalorder %s20, 0
      %p76 = por %p74, %p75
      %p77 = scmp.ne.s32.totalorder %s63, %s64
      %p78 = scmp.eq.s32.totalorder %s21, 1
      %p79 = por %p77, %p78
      %p81 = scmp.ne.s32.totalorder %s64, %s80
      %p82 = scmp.eq.s32.totalorder %s21, 0
      %p83 = por %p81, %p82
      %s84 = ssub.s32 %s22, %s34
      %s85 = ssub.s32 %s23, %s30
      %s86 = sor.u32 %s84, %s85
      %p87 = scmp.eq.s32.totalorder %s86, 0
      %s89 = sadd.s32 %s88, 1
      %s90 = scalar_select %p87, %s88, %s89
      %p93 = pneg %p87
      %p94 = scmp.eq.s32.totalorder %s15, 1
      %p95 = por %p93, %p94
      %p96 = scmp.ne.s32.totalorder %s88, %s91
      %p97 = scmp.eq.s32.totalorder %s15, 0
      %p98 = por %p96, %p97
      %p99 = scmp.ne.s32.totalorder %s88, %s91
      %p100 = scmp.eq.s32.totalorder %s20, 1
      %p101 = por %p99, %p100
      %p102 = scmp.ne.s32.totalorder %s91, %s92
      %p103 = scmp.eq.s32.totalorder %s20, 0
      %p104 = por %p102, %p103
      %p105 = scmp.ne.s32.totalorder %s91, %s92
      %p106 = scmp.eq.s32.totalorder %s21, 1
      %p107 = por %p105, %p106
      %p109 = scmp.ne.s32.totalorder %s92, %s108
      %p110 = scmp.eq.s32.totalorder %s21, 0
      %p111 = por %p109, %p110
      %s112 = ssub.s32 %s22, %s34
      %s113 = ssub.s32 %s23, %s30
      %s114 = sor.u32 %s112, %s113
      %p115 = scmp.eq.s32.totalorder %s114, 0
      %s117 = sadd.s32 %s116, 1
      %s118 = scalar_select %p115, %s116, %s117
      %p121 = pneg %p115
      %p122 = scmp.eq.s32.totalorder %s15, 1
      %p123 = por %p121, %p122
      %p124 = scmp.ne.s32.totalorder %s116, %s119
      %p125 = scmp.eq.s32.totalorder %s15, 0
      %p126 = por %p124, %p125
      %p127 = scmp.ne.s32.totalorder %s116, %s119
      %p128 = scmp.eq.s32.totalorder %s20, 1
      %p129 = por %p127, %p128
      %p130 = scmp.ne.s32.totalorder %s119, %s120
      %p131 = scmp.eq.s32.totalorder %s20, 0
      %p132 = por %p130, %p131
      %p133 = scmp.ne.s32.totalorder %s119, %s120
      %p134 = scmp.eq.s32.totalorder %s21, 1
      %p135 = por %p133, %p134
      %p137 = scmp.ne.s32.totalorder %s120, %s136
      %p138 = scmp.eq.s32.totalorder %s21, 0
      %p139 = por %p137, %p138
      %s140 = ssub.s32 %s22, %s34
      %s141 = ssub.s32 %s23, %s30
      %s142 = sor.u32 %s140, %s141
      %p143 = scmp.eq.s32.totalorder %s142, 0
      %s145 = sadd.s32 %s144, 1
      %s146 = scalar_select %p143, %s144, %s145
      %p149 = pneg %p143
      %p150 = scmp.eq.s32.totalorder %s15, 1
      %p151 = por %p149, %p150
      %p152 = scmp.ne.s32.totalorder %s144, %s147
      %p153 = scmp.eq.s32.totalorder %s15, 0
      %p154 = por %p152, %p153
      %p155 = scmp.ne.s32.totalorder %s144, %s147
      %p156 = scmp.eq.s32.totalorder %s20, 1
      %p157 = por %p155, %p156
      %p158 = scmp.ne.s32.totalorder %s147, %s148
      %p159 = scmp.eq.s32.totalorder %s20, 0
      %p160 = por %p158, %p159
      %p161 = scmp.ne.s32.totalorder %s147, %s148
      %p162 = scmp.eq.s32.totalorder %s21, 1
      %p163 = por %p161, %p162
      %p165 = scmp.ne.s32.totalorder %s148, %s164
      %p166 = scmp.eq.s32.totalorder %s21, 0
      %p167 = por %p165, %p166
      %p168 = scmp.le.s32.totalorder 1, %s15
      %p169 = scmp.lt.s32.totalorder %s15, 3
      %p170 = pnand %p168, %p169
      %p171 = pneg %p170
      // Predicated region
      $region9: #{tpu_custom_call.1} parent=5 // pred_check
        _
      $region10: #{tpu_custom_call.1} parent=5 // pred_check_branch
        %173 = sbr.rel (%p170) target = $region12
      $region11: #{tpu_custom_call.1} parent=5 // pred_region
        %s174 = ssub.s32 %s15, 1
        // Predicated region
        $region13: #{tpu_custom_call.1} parent=11 // pred_check
          %p175 = pneg %p48
        $region14: #{tpu_custom_call.1} parent=11 // pred_check_branch
          %177 = sbr.rel (%p175) target = $region16
        $region15: #{tpu_custom_call.1} parent=11 // pred_region
          %179 = vsyncadd [#allocation3], 0
          %s180 = sshll.u32 %s0, 4
          %s181 = int_to_ptr.hbm [resolvable:$true] %s180
          %s182 = sshll.u32 [#allocation2], 4
          %s183 = int_to_ptr.vmem [resolvable:$true] %s182
          %188 = dma.hbm_to_vmem [thread:$0]  %s181, 512, %s183, [#allocation3], 128, 128, 8
        $region16: #{tpu_custom_call.1} parent=11 // pred_fallthru
          _
      $region12: #{tpu_custom_call.1} parent=5 // pred_fallthru
        _
      %p189 = scmp.lt.s32.totalorder %s15, 2
      // Predicated region
      $region17: #{tpu_custom_call.1} parent=5 // pred_check
        %p190 = pneg %p189
      $region18: #{tpu_custom_call.1} parent=5 // pred_check_branch
        %192 = sbr.rel (%p190) target = $region20
      $region19: #{tpu_custom_call.1} parent=5 // pred_region
        // Predicated region
        $region21: #{tpu_custom_call.1} parent=19 // pred_check
          %p193 = pneg %p70
        $region22: #{tpu_custom_call.1} parent=19 // pred_check_branch
          %195 = sbr.rel (%p193) target = $region24
        $region23: #{tpu_custom_call.1} parent=19 // pred_region
          %s196 = sand.u32 %s15, 1
          %s197 = scalar_lea.sflag [#allocation5], %s196
          %s198 = sand.u32 %s60, 1
          %s199 = smul.addr %s198, 32
          %s200 = scalar_lea.vmem [#allocation4], %s199
          %202 = vsyncadd %s197, 0
          %s203 = smul.addr %s22, 4
          %s204 = sadd.s32 %s23, %s203
          %s205 = smul.addr %s204, 8
          %s206 = scalar_lea.hbm %s1, %s205
          %s207 = sshll.u32 %s206, 4
          %s208 = int_to_ptr.hbm [resolvable:$true] %s207
          %s209 = sshll.u32 %s200, 4
          %s210 = int_to_ptr.vmem [resolvable:$true] %s209
          %215 = dma.hbm_to_vmem [thread:$0]  %s208, 512, %s210, %s197, 128, 128, 8
        $region24: #{tpu_custom_call.1} parent=19 // pred_fallthru
          _
        // Predicated region
        $region25: #{tpu_custom_call.1} parent=19 // pred_check
          %p216 = pneg %p98
        $region26: #{tpu_custom_call.1} parent=19 // pred_check_branch
          %218 = sbr.rel (%p216) target = $region28
        $region27: #{tpu_custom_call.1} parent=19 // pred_region
          %s219 = sand.u32 %s15, 1
          %s220 = scalar_lea.sflag [#allocation5], %s219
          %s221 = sand.u32 %s88, 1
          %s222 = smul.addr %s221, 8
          %s223 = scalar_lea.vmem [#allocation6], %s222
          %225 = vsyncadd %s220, 0
          %s226 = sadd.s32 %s23, %s22
          %s227 = smul.addr %s226, 8
          %s228 = scalar_lea.hbm %s2, %s227
          %s230 = sshll.u32 %s228, 4
          %s231 = int_to_ptr.hbm [resolvable:$true] %s230
          %s232 = sshll.u32 %s223, 4
          %s233 = int_to_ptr.vmem [resolvable:$true] %s232
          %235 = dma.hbm_to_vmem [thread:$0]  %s231, 128, %s233, %s220
        $region28: #{tpu_custom_call.1} parent=19 // pred_fallthru
          _
      $region20: #{tpu_custom_call.1} parent=5 // pred_fallthru
        _
      %p236 = scmp.le.s32.totalorder 1, %s15
      %p237 = scmp.lt.s32.totalorder %s15, 3
      %p238 = pnand %p236, %p237
      %p239 = pneg %p238
      // Predicated region
      $region29: #{tpu_custom_call.1} parent=5 // pred_check
        _
      $region30: #{tpu_custom_call.1} parent=5 // pred_check_branch
        %241 = sbr.rel (%p238) target = $region32
      $region31: #{tpu_custom_call.1} parent=5 // pred_region
        %s242 = ssub.s32 %s15, 1
        // Predicated region
        $region33: #{tpu_custom_call.1} parent=31 // pred_check
          %p243 = pneg %p48
        $region34: #{tpu_custom_call.1} parent=31 // pred_check_branch
          %245 = sbr.rel (%p243) target = $region36
        $region35: #{tpu_custom_call.1} parent=31 // pred_region
          %247 = dma.done [#allocation3], 512
        $region36: #{tpu_custom_call.1} parent=31 // pred_fallthru
          _
        %s248 = sand.u32 %s20, 1
        %s249 = scalar_lea.sflag [#allocation5], %s248
        %s250 = sand.u32 %s63, 1
        %s251 = smul.addr %s250, 32
        %s252 = scalar_lea.vmem [#allocation4], %s251
        // Predicated region
        $region37: #{tpu_custom_call.1} parent=31 // pred_check
          %p253 = pneg %p76
        $region38: #{tpu_custom_call.1} parent=31 // pred_check_branch
          %255 = sbr.rel (%p253) target = $region40
        $region39: #{tpu_custom_call.1} parent=31 // pred_region
          %257 = dma.done %s249, 512
        $region40: #{tpu_custom_call.1} parent=31 // pred_fallthru
          _
        %s258 = sand.u32 %s20, 1
        %s259 = scalar_lea.sflag [#allocation5], %s258
        %s260 = sand.u32 %s91, 1
        %s261 = smul.addr %s260, 8
        %s262 = scalar_lea.vmem [#allocation6], %s261
        // Predicated region
        $region41: #{tpu_custom_call.1} parent=31 // pred_check
          %p263 = pneg %p104
        $region42: #{tpu_custom_call.1} parent=31 // pred_check_branch
          %265 = sbr.rel (%p263) target = $region44
        $region43: #{tpu_custom_call.1} parent=31 // pred_region
          %267 = dma.done %s259, 128
        $region44: #{tpu_custom_call.1} parent=31 // pred_fallthru
          _
        %p268 = pneg %p48
        %p269 = pneg %p45
        %s270 = sand.u32 %s20, 1
        %s271 = scalar_lea.sflag [#allocation5], %s270
        %s272 = sand.u32 %s63, 1
        %s273 = smul.addr %s272, 32
        %s274 = scalar_lea.vmem [#allocation4], %s273
        %p275 = pneg %p76
        %p276 = pneg %p73
        %s277 = sand.u32 %s20, 1
        %s278 = scalar_lea.sflag [#allocation5], %s277
        %s279 = sand.u32 %s91, 1
        %s280 = smul.addr %s279, 8
        %s281 = scalar_lea.vmem [#allocation6], %s280
        %p282 = pneg %p104
        %p283 = pneg %p101
        %p284 = pneg %p132
        %p285 = pneg %p129
        %p286 = scmp.lt.s32.totalorder %s24, 1
        %s287 = scalar_select %p286, %s24, 1
        %p288 = scmp.lt.s32.totalorder %s25, 0
        %s289 = scalar_select %p288, %s25, 0
        %s290 = sadd.s32 %s289, %s287
        %s291 = scalar_lea.vmem %s3, %s290
        %p292 = pneg %p160
        %p293 = pneg %p157
        %p294 = scmp.lt.s32.totalorder %s24, 1
        %s295 = scalar_select %p294, %s24, 1
        %p296 = scmp.lt.s32.totalorder %s25, 0
        %s297 = scalar_select %p296, %s25, 0
        %s298 = sadd.s32 %s297, %s295
        %s299 = scalar_lea.vmem %s4, %s298
        %p300 = scmp.lt.s32.totalorder %s24, 1
        %s301 = scalar_select %p300, %s24, 1
        %p302 = scmp.lt.s32.totalorder %s25, 0
        %s303 = scalar_select %p302, %s25, 0
        %s304 = sadd.s32 %s303, %s301
        %s305 = scalar_lea.vmem %s3, %s304
        %p306 = scmp.lt.s32.totalorder %s24, 1
        %s307 = scalar_select %p306, %s24, 1
        %p308 = scmp.lt.s32.totalorder %s25, 0
        %s309 = scalar_select %p308, %s25, 0
        %s310 = sadd.s32 %s309, %s307
        %s311 = scalar_lea.vmem %s4, %s310
        %v312 = vld [vmem:[#allocation2] sm:$0xff]
        %v313 = vld [vmem:[#allocation2 + $0x8] sm:$0xff]
        %v314 = vld [vmem:[#allocation2 + $0x10] sm:$0xff]
        %v315 = vld [vmem:[#allocation2 + $0x18] sm:$0xff]
        %v316 = vld [vmem:[%s252] sm:$0xff]
        %v317 = vld [vmem:[%s252 + $0x8] sm:$0xff]
        %v318 = vld [vmem:[%s252 + $0x10] sm:$0xff]
        %v319 = vld [vmem:[%s252 + $0x18] sm:$0xff]
        %v320 = vld [vmem:[%s262] sm:$0xff]
        %v321 = vmax.f32 %v316, %v317
        %v322 = vmax.f32 %v318, %v319
        %v323 = vmax.f32 %v321, %v322
        %v324 = vsub.f32 %v316, %v323
        %v325 = vsub.f32 %v317, %v323
        %v326 = vsub.f32 %v318, %v323
        %v327 = vsub.f32 %v319, %v323
        %v328 = vmul.f32 %v324, 1.442695
        %v329 = vpow.pop %v328
        %v330 = vmul.f32 %v325, 1.442695
        %v331 = vpow.pop %v330
        %v332 = vmul.f32 %v326, 1.442695
        %v333 = vpow.pop %v332
        %v334 = vmul.f32 %v327, 1.442695
        %v335 = vpow.pop %v334
        %v336 = vadd.f32 %v329, %v331
        %v337 = vadd.f32 %v336, %v333
        %v338 = vadd.f32 %v337, %v335
        %vm339 = vcmp.eq.s32.totalorder %v320, 0
        %vm340 = vcmp.eq.s32.totalorder %v320, 1
        %vm341 = vcmp.eq.s32.totalorder %v320, 2
        %vm342 = vcmp.eq.s32.totalorder %v320, 3
        %v343 = vsel %vm339, %v324, 0.0
        %v344 = vsel %vm340, %v325, 0.0
        %v345 = vsel %vm341, %v326, 0.0
        %v346 = vsel %vm342, %v327, 0.0
        %v347 = vadd.f32 %v343, %v344
        %v348 = vadd.f32 %v347, %v345
        %v349 = vadd.f32 %v348, %v346
        %v350 = vsel %vm339, %v312, 0.0
        %v351 = vsel %vm340, %v313, 0.0
        %v352 = vsel %vm341, %v314, 0.0
        %v353 = vsel %vm342, %v315, 0.0
        %v354 = vadd.f32 %v350, %v351
        %v355 = vadd.f32 %v354, %v352
        %v356 = vadd.f32 %v355, %v353
        %v357 = vlog2.pop %v338
        %v358 = vmul.f32 %v357, 0.6931472
        %v359 = vsub.f32 %v349, %v358
        %vm360 = vcmp.ne.s32.totalorder %v320, 255
        %v361 = vsub.f32 0.0, %v356
        %v362 = vmul.f32 %v361, %v359
        %v363 = vsel %vm360, %v362, 0.0
        %v364 = vadd.f32 %v363, 0.0
        %v365 = vsel %vm360, %v356, 0.0
        %v366 = vadd.f32 %v365, 0.0
        %367 = vadd.xlane.f32.xlu0 %v364
        %v368 = vpop.xlane.xlu0 %367
        %v369 = vrot.slane %v368, 4
        %v370 = vadd.f32 %v368, %v369
        %v371 = vrot.slane %v370, 2
        %v372 = vadd.f32 %v370, %v371
        %v373 = vrot.slane %v372, 1
        %v374 = vadd.f32 %v372, %v373
        %s375 = vtos %v374
        %v376 = vstv %s375
        %vm377 = vcmask 0
        %378 = vst.msk [vmem:[%s305] sm:$0x1] %vm377, %v376
        %379 = vadd.xlane.f32.xlu0 %v366
        %v380 = vpop.xlane.xlu0 %379
        %v381 = vrot.slane %v380, 4
        %v382 = vadd.f32 %v380, %v381
        %v383 = vrot.slane %v382, 2
        %v384 = vadd.f32 %v382, %v383
        %v385 = vrot.slane %v384, 1
        %v386 = vadd.f32 %v384, %v385
        %s387 = vtos %v386
        %v388 = vstv %s387
        %389 = vst.msk [vmem:[%s311] sm:$0x1] %vm377, %v388
        %p390 = scmp.lt.s32.totalorder %s24, 1
        %s391 = scalar_select %p390, %s24, 1
        %p392 = scmp.lt.s32.totalorder %s25, 0
        %s393 = scalar_select %p392, %s25, 0
        %s394 = sadd.s32 %s393, %s391
        %s395 = scalar_lea.vmem %s3, %s394
        %p396 = scmp.lt.s32.totalorder %s24, 1
        %s397 = scalar_select %p396, %s24, 1
        %p398 = scmp.lt.s32.totalorder %s25, 0
        %s399 = scalar_select %p398, %s25, 0
        %s400 = sadd.s32 %s399, %s397
        %s401 = scalar_lea.vmem %s4, %s400
        // Predicated region
        $region45: #{tpu_custom_call.1} parent=31 // pred_check
          %p402 = pneg %p129
        $region46: #{tpu_custom_call.1} parent=31 // pred_check_branch
          %404 = sbr.rel (%p402) target = $region48
        $region47: #{tpu_custom_call.1} parent=31 // pred_region
          _
        $region48: #{tpu_custom_call.1} parent=31 // pred_fallthru
          _
        // Predicated region
        $region49: #{tpu_custom_call.1} parent=31 // pred_check
          %p405 = pneg %p157
        $region50: #{tpu_custom_call.1} parent=31 // pred_check_branch
          %407 = sbr.rel (%p405) target = $region52
        $region51: #{tpu_custom_call.1} parent=31 // pred_region
          _
        $region52: #{tpu_custom_call.1} parent=31 // pred_fallthru
          _
      $region32: #{tpu_custom_call.1} parent=5 // pred_fallthru
        _
      %p408 = scmp.le.s32.totalorder 2, %s15
      // Predicated region
      $region53: #{tpu_custom_call.1} parent=5 // pred_check
        %p409 = pneg %p408
      $region54: #{tpu_custom_call.1} parent=5 // pred_check_branch
        %411 = sbr.rel (%p409) target = $region56
      $region55: #{tpu_custom_call.1} parent=5 // pred_region
        %s412 = ssub.s32 %s15, 2
        // Predicated region
        $region57: #{tpu_custom_call.1} parent=55 // pred_check
          %p413 = pneg %p135
        $region58: #{tpu_custom_call.1} parent=55 // pred_check_branch
          %415 = sbr.rel (%p413) target = $region60
        $region59: #{tpu_custom_call.1} parent=55 // pred_region
          %p416 = scmp.lt.s32.totalorder %s26, 1
          %s417 = scalar_select %p416, %s26, 1
          %p418 = scmp.lt.s32.totalorder %s27, 0
          %s419 = scalar_select %p418, %s27, 0
          %s420 = sadd.s32 %s419, %s417
          %s421 = scalar_lea.vmem %s3, %s420
        $region60: #{tpu_custom_call.1} parent=55 // pred_fallthru
          _
        // Predicated region
        $region61: #{tpu_custom_call.1} parent=55 // pred_check
          %p422 = pneg %p163
        $region62: #{tpu_custom_call.1} parent=55 // pred_check_branch
          %424 = sbr.rel (%p422) target = $region64
        $region63: #{tpu_custom_call.1} parent=55 // pred_region
          %p425 = scmp.lt.s32.totalorder %s26, 1
          %s426 = scalar_select %p425, %s26, 1
          %p427 = scmp.lt.s32.totalorder %s27, 0
          %s428 = scalar_select %p427, %s27, 0
          %s429 = sadd.s32 %s428, %s426
          %s430 = scalar_lea.vmem %s4, %s429
        $region64: #{tpu_custom_call.1} parent=55 // pred_fallthru
          _
      $region56: #{tpu_custom_call.1} parent=5 // pred_fallthru
        _
    $region6: #{tpu_custom_call.1} parent=1 // loop_footer
      %s19 = sadd.s32 1, %s15
    $region7: #{tpu_custom_call.1} parent=1 // loop_footer_branch
      %14 = sbr.rel target = $region3
    $region8: #{tpu_custom_call.1} parent=1 // loop_exit
      _
    %431 = vsyncpa [#allocation3], 1
    %s432 = scalar_lea.sflag [#allocation3], 1
    %433 = vsyncpa %s432, 1
    %434 = vsyncpa [#allocation5], 1
    %s435 = scalar_lea.sflag [#allocation5], 1
    %436 = vsyncpa %s435, 1

</llo_original>
